<compile_context>
chip_gen: v6e
topology: v6e:2x2x1
jax: 0.10.0
libtpu: 0.0.40
codegen_flags: <defaults>
</compile_context>

<pallas_src>
import math

import jax
import jax.numpy as jnp
from jax.experimental import pallas as pl
from jax.experimental.pallas import tpu as pltpu

# ---- small, deterministic problem sizes consistent with the module ----
SEQ_LEN = 8      # dim 0: the axis softmax / sum run over
BATCH = 4        # dim 1
D_MODEL = 32     # dim 2: feature axis, input to nn.Linear(d_model, seq_len)


def attention_layer_kernel(x_ref, wproj_ref, out_ref):
    """Fused AttentionLayer forward, fully flat / lane-dense.

    x_ref     : (S, B*D)   f32 VMEM  -- input, flattened batch*feature rows
    wproj_ref : (B*D, B*D) f32 VMEM  -- block-diag folded Linear+mean weights
    out_ref   : (1, B*D)   f32 VMEM  -- weighted_x.sum(dim=0), flattened
    """
    x = x_ref[...]                                                   # (S, BD)

    # scores_full[s, j] = x[s, batch(j), :] . mean_rows(W)  (replicated across
    # that batch's D lanes).  Block-diag matmul keeps the flat lane layout and
    # puts the segment reduction on the otherwise-idle MXU.
    scores = jnp.dot(x, wproj_ref[...],
                     preferred_element_type=jnp.float32)             # (S, BD)

    # Numerically-stable softmax over dim 0 (sequence axis) with deferred
    # normalization: only accumulate numerator sums, divide once at the end.
    m = jnp.max(scores, axis=0, keepdims=True)                       # (1, BD)
    e = jnp.exp(scores - m)                                          # (S, BD) (EUP)
    l = jnp.sum(e, axis=0, keepdims=True)                            # (1, BD)
    acc = jnp.sum(e * x, axis=0, keepdims=True)                      # (1, BD)

    out_ref[...] = acc * pl.reciprocal(l, approx=True)               # one full-lane vst


def fold_params(params, batch):
    """One-time fold of Linear(d_model, seq_len) + mean(dim=-1) for `batch` columns.

    mean_j(x . W[j,:] + b[j]) == x . mean_j(W[j,:]) + mean_j(b)  (exact), and the
    bias term is dropped because softmax over dim 0 is shift-invariant.
    The mean weight vector is embedded in a block-diagonal (B*D, B*D) matrix so
    the in-kernel score step is one lane-preserving matmul on the flat layout.
    """
    w_mean = jnp.mean(params["w"].astype(jnp.float32), axis=0)       # (D,)
    d = w_mean.shape[0]
    bd = batch * d
    seg = jnp.arange(bd) // d
    block_mask = (seg[:, None] == seg[None, :]).astype(jnp.float32)  # (BD, BD)
    w_proj = jnp.tile(w_mean, batch)[:, None] * block_mask           # (BD, BD)
    return w_proj


@jax.jit
def attention_layer_forward(w_proj, x):
    """x: (seq_len, batch, d_model); softmax/sum over dim 0. Returns (batch, d_model)."""
    s, b, d = x.shape
    x_flat = x.reshape(s, b * d).astype(jnp.float32)                 # (8, 128): 1 vreg

    out_flat = pl.pallas_call(
        attention_layer_kernel,
        out_shape=jax.ShapeDtypeStruct((1, b * d), jnp.float32),
        in_specs=[
            pl.BlockSpec(memory_space=pltpu.MemorySpace.VMEM),        # x (flat)
            pl.BlockSpec(memory_space=pltpu.MemorySpace.VMEM),        # folded weight proj
        ],
        out_specs=pl.BlockSpec(memory_space=pltpu.MemorySpace.VMEM),
        compiler_params=pltpu.CompilerParams(vmem_limit_bytes=4 << 20),
    )(x_flat, w_proj)

    return out_flat.reshape(b, d)


def init_params(key, d_model=D_MODEL, seq_len=SEQ_LEN):
    """nn.Linear(d_model, seq_len) default init: U(-1/sqrt(d_model), 1/sqrt(d_model))."""
    k_w, k_b = jax.random.split(key)
    bound = 1.0 / math.sqrt(d_model)
    return {
        "w": jax.random.uniform(k_w, (seq_len, d_model), jnp.float32, -bound, bound),
        "b": jax.random.uniform(k_b, (seq_len,), jnp.float32, -bound, bound),
    }


if __name__ == "__main__":
    key = jax.random.PRNGKey(0)
    k_params, k_x = jax.random.split(key)

    params = init_params(k_params)
    x = jax.random.normal(k_x, (SEQ_LEN, BATCH, D_MODEL), jnp.float32)

    # Fold once (init-time), reuse for every forward call.
    w_proj = fold_params(params, BATCH)

    out = attention_layer_forward(w_proj, x)
    out = jax.block_until_ready(out)

    # Pure-JAX reference mirroring the PyTorch forward exactly (un-folded Linear,
    # bias included -- the fold / bias-drop must be numerically invisible).
    scores_ref = jnp.mean(x @ params["w"].T + params["b"], axis=-1)   # (S, B)
    weights_ref = jax.nn.softmax(scores_ref, axis=0)                  # softmax over dim 0
    ref = jnp.sum(x * weights_ref[:, :, None], axis=0)                # (B, D)

    assert out.shape == (BATCH, D_MODEL)
    assert bool(jnp.all(jnp.isfinite(out)))
    # Tolerance allows for the approx-EUP reciprocal and MXU f32 matmul path.
    assert bool(jnp.allclose(out, ref, atol=2e-3, rtol=2e-3))
    print("KERNEL_OK")
</pallas_src>

<mosaic_0001>
module attributes {stable_mosaic.version = 11 : i64} {
  func.func @attention_layer_kernel(%arg0: memref<8x128xf32, #tpu.memory_space<vmem>>, %arg1: memref<128x128xf32, #tpu.memory_space<vmem>>, %arg2: memref<1x128xf32, #tpu.memory_space<vmem>>) attributes {dimension_semantics = [], scalar_prefetch = 0 : i64, scratch_operands = 0 : i64, tpu.core_type = #tpu.core_type<tc>} {
    %c0 = arith.constant 0 : index
    %c0_0 = arith.constant 0 : index
    %0 = vector.load %arg0[%c0, %c0_0] : memref<8x128xf32, #tpu.memory_space<vmem>>, vector<8x128xf32>
    %c0_1 = arith.constant 0 : index
    %c0_2 = arith.constant 0 : index
    %1 = vector.load %arg1[%c0_1, %c0_2] : memref<128x128xf32, #tpu.memory_space<vmem>>, vector<128x128xf32>
    %cst = arith.constant dense<0.000000e+00> : vector<8x128xf32>
    %2 = tpu.matmul %0, %1, %cst {dimension_numbers = #tpu.dot_dimension_numbers<[1], [0], [0], [1], [0, 0, 1, 1], [], []>} : vector<8x128xf32>, vector<128x128xf32>, vector<8x128xf32> -> vector<8x128xf32>
    %cst_3 = arith.constant dense<0xFF800000> : vector<128xf32>
    %3 = vector.multi_reduction <maximumf>, %2, %cst_3 [0] : vector<8x128xf32> to vector<128xf32>
    %4 = vector.shape_cast %3 : vector<128xf32> to vector<1x128xf32>
    %5 = vector.broadcast %4 : vector<1x128xf32> to vector<8x128xf32>
    %6 = arith.subf %2, %5 : vector<8x128xf32>
    %7 = math.exp %6 : vector<8x128xf32>
    %cst_4 = arith.constant dense<0.000000e+00> : vector<128xf32>
    %8 = vector.multi_reduction <add>, %7, %cst_4 [0] : vector<8x128xf32> to vector<128xf32>
    %9 = vector.shape_cast %8 : vector<128xf32> to vector<1x128xf32>
    %10 = arith.mulf %7, %0 : vector<8x128xf32>
    %cst_5 = arith.constant dense<0.000000e+00> : vector<128xf32>
    %11 = vector.multi_reduction <add>, %10, %cst_5 [0] : vector<8x128xf32> to vector<128xf32>
    %12 = vector.shape_cast %11 : vector<128xf32> to vector<1x128xf32>
    %13 = tpu.reciprocal %9 {approx = true} : vector<1x128xf32> -> vector<1x128xf32>
    %14 = arith.mulf %12, %13 : vector<1x128xf32>
    %c0_6 = arith.constant 0 : index
    %c0_7 = arith.constant 0 : index
    %15 = vector.load %arg2[%c0_6, %c0_7] : memref<1x128xf32, #tpu.memory_space<vmem>>, vector<1x128xf32>
    tpu.vector_store %arg2[%c0_6, %c0_7], %14 {strides = array<i32>} : memref<1x128xf32, #tpu.memory_space<vmem>>, vector<1x128xf32>,
    return
  }
}

</mosaic_0001>

<llo_original>
// kernel: attention_layer_forward.1
$region0: #{attention_layer_forward.1}
  #allocation0 [shape = 'u32[]', space=smem, size = 0x4, offset = 0x4, fixed_abs, tag = 'smem constant byte address 0x4 - core index']
  #allocation1 [shape = 'u32[144,128]{1,0:T(1,128)}', space=vmem, size = 0x12000, scoped, tag = 'internal scratch']
  %s0 = inlined_call_operand.vmem [shape: f32[8,128], index: 0, kind: input, shape index: {}]
  %s1 = inlined_call_operand.hbm [shape: f32[128,128], index: 1, kind: input, shape index: {}]
  %s2 = inlined_call_operand.vmem [shape: f32[1,128], index: 2, kind: output, shape index: {}]
  %s3 = sld [smem:[#allocation0]]
  $region22: #{attention_layer_forward.1} parent=0
    _
  %s5 = ssub.s32 1, %s3
  %s6 = scalar_select 0, %s5, %s3
  $region1: #{attention_layer_forward.1} parent=0
    #allocation2 [shape = 'u8[65536]{0}', space=vmem, size = 0x10000, scoped, tag = 'input window, operand 1, single buffered']
    #allocation3 [shape = 's32[1]{0}', space=sflag, size = 0x4, scoped, tag = 'scoped memory for attention_layer_forward.1']
    %7 = vsyncpa [#allocation3], 0
    // Predicated region
    $region2: #{attention_layer_forward.1} parent=1 // pred_check
      _
    $region3: #{attention_layer_forward.1} parent=1 // pred_check_branch
      %9 = sbr.rel (0) target = $region5
    $region4: #{attention_layer_forward.1} parent=1 // pred_region
      _
    $region5: #{attention_layer_forward.1} parent=1 // pred_fallthru
      _
    // Predicated region
    $region6: #{attention_layer_forward.1} parent=1 // pred_check
      _
    $region7: #{attention_layer_forward.1} parent=1 // pred_check_branch
      %11 = sbr.rel (0) target = $region9
    $region8: #{attention_layer_forward.1} parent=1 // pred_region
      %s13 = ssub.s32 2048, 2048
      %14 = vsyncadd [#allocation3], %s13
      %s15 = sshll.u32 [#allocation2], 4
      %s16 = int_to_ptr.vmem [resolvable:$true] %s15
      %21 = dma.hbm_to_vmem [thread:$0]  %s1, 2048, %s16, [#allocation3], 128, 128, 8
    $region9: #{attention_layer_forward.1} parent=1 // pred_fallthru
      _
    // Predicated region
    $region10: #{attention_layer_forward.1} parent=1 // pred_check
      _
    $region11: #{attention_layer_forward.1} parent=1 // pred_check_branch
      %23 = sbr.rel (0) target = $region13
    $region12: #{attention_layer_forward.1} parent=1 // pred_region
      %24 = dma.done [#allocation3], 2048
    $region13: #{attention_layer_forward.1} parent=1 // pred_fallthru
      _
    %v25 = vld [vmem:[%s0] sm:$0xff]
    %v26 = vld [vmem:[#allocation2] sm:$0xff]
    %v27 = vld [vmem:[#allocation2 + $0x8] sm:$0xff]
    %v28 = vld [vmem:[#allocation2 + $0x10] sm:$0xff]
    %v29 = vld [vmem:[#allocation2 + $0x18] sm:$0xff]
    %v30 = vld [vmem:[#allocation2 + $0x20] sm:$0xff]
    %v31 = vld [vmem:[#allocation2 + $0x28] sm:$0xff]
    %v32 = vld [vmem:[#allocation2 + $0x30] sm:$0xff]
    %v33 = vld [vmem:[#allocation2 + $0x38] sm:$0xff]
    %v34 = vld [vmem:[#allocation2 + $0x40] sm:$0xff]
    %v35 = vld [vmem:[#allocation2 + $0x48] sm:$0xff]
    %v36 = vld [vmem:[#allocation2 + $0x50] sm:$0xff]
    %v37 = vld [vmem:[#allocation2 + $0x58] sm:$0xff]
    %v38 = vld [vmem:[#allocation2 + $0x60] sm:$0xff]
    %v39 = vld [vmem:[#allocation2 + $0x68] sm:$0xff]
    %v40 = vld [vmem:[#allocation2 + $0x70] sm:$0xff]
    %v41 = vld [vmem:[#allocation2 + $0x78] sm:$0xff]
    %42 = vmatprep.subr.mxu0 0.0
    %43 = vmatpush1.msra.mxu0 %v41
    %44 = vmatprep.subr.mxu0 0.0
    %45 = vmatpush1.msra.mxu0 %v40
    %46 = vmatprep.subr.mxu0 0.0
    %47 = vmatpush1.msra.mxu0 %v39
    %48 = vmatprep.subr.mxu0 0.0
    %49 = vmatpush1.msra.mxu0 %v38
    %50 = vmatprep.subr.mxu0 0.0
    %51 = vmatpush1.msra.mxu0 %v37
    %52 = vmatprep.subr.mxu0 0.0
    %53 = vmatpush1.msra.mxu0 %v36
    %54 = vmatprep.subr.mxu0 0.0
    %55 = vmatpush1.msra.mxu0 %v35
    %56 = vmatprep.subr.mxu0 0.0
    %57 = vmatpush1.msra.mxu0 %v34
    %58 = vmatprep.subr.mxu0 0.0
    %59 = vmatpush1.msra.mxu0 %v33
    %60 = vmatprep.subr.mxu0 0.0
    %61 = vmatpush1.msra.mxu0 %v32
    %62 = vmatprep.subr.mxu0 0.0
    %63 = vmatpush1.msra.mxu0 %v31
    %64 = vmatprep.subr.mxu0 0.0
    %65 = vmatpush1.msra.mxu0 %v30
    %66 = vmatprep.subr.mxu0 0.0
    %67 = vmatpush1.msra.mxu0 %v29
    %68 = vmatprep.subr.mxu0 0.0
    %69 = vmatpush1.msra.mxu0 %v28
    %70 = vmatprep.subr.mxu0 0.0
    %71 = vmatpush1.msra.mxu0 %v27
    %72 = vmatprep.subr.mxu0 0.0
    %73 = vmatpush1.msra.mxu0 %v26
    %74 = vmatprep.subr.mxu0 0.0
    %75 = vmatpush2.msra.mxu0 0.0
    %76 = vmatprep.subr.mxu0 0.0
    %77 = vmatpush2.msra.mxu0 0.0
    %78 = vmatprep.subr.mxu0 0.0
    %79 = vmatpush2.msra.mxu0 0.0
    %80 = vmatprep.subr.mxu0 0.0
    %81 = vmatpush2.msra.mxu0 0.0
    %82 = vmatprep.subr.mxu0 0.0
    %83 = vmatpush2.msra.mxu0 0.0
    %84 = vmatprep.subr.mxu0 0.0
    %85 = vmatpush2.msra.mxu0 0.0
    %86 = vmatprep.subr.mxu0 0.0
    %87 = vmatpush2.msra.mxu0 0.0
    %88 = vmatprep.subr.mxu0 0.0
    %89 = vmatpush2.msra.mxu0 0.0
    %90 = vmatprep.subr.mxu0 0.0
    %91 = vmatpush2.msra.mxu0 0.0
    %92 = vmatprep.subr.mxu0 0.0
    %93 = vmatpush2.msra.mxu0 0.0
    %94 = vmatprep.subr.mxu0 0.0
    %95 = vmatpush2.msra.mxu0 0.0
    %96 = vmatprep.subr.mxu0 0.0
    %97 = vmatpush2.msra.mxu0 0.0
    %98 = vmatprep.subr.mxu0 0.0
    %99 = vmatpush2.msra.mxu0 0.0
    %100 = vmatprep.subr.mxu0 0.0
    %101 = vmatpush2.msra.mxu0 0.0
    %102 = vmatprep.subr.mxu0 0.0
    %103 = vmatpush2.msra.mxu0 0.0
    %104 = vmatprep.subr.mxu0 0.0
    %105 = vmatpush2.msra.mxu0 0.0
    %106 = vmatprep.mubr.f32.mxu0 0.0
    %107 = vmatmul.mubr.f32.gmra.mxu0 %v25
    %v108 = vpop.f32.mrf.mxu0
    %v109 = vadd.f32 0.0, %v108
    %v110 = vpop.f32.mrf.mxu0
    %111 = vdwg.mxu0
    %v112 = vrot.slane %v109, 4
    %v113 = vmax.f32 %v109, %v112
    %v114 = vrot.slane %v113, 2
    %v115 = vmax.f32 %v113, %v114
    %v116 = vrot.slane %v115, 1
    %v117 = vmax.f32 %v115, %v116
    %v118 = vsub.f32 %v109, %v117
    %v119 = vmul.f32 %v118, 1.442695
    %v120 = vpow.pop %v119
    %v121 = vrot.slane %v120, 4
    %v122 = vadd.f32 %v120, %v121
    %v123 = vrot.slane %v122, 2
    %v124 = vadd.f32 %v122, %v123
    %v125 = vrot.slane %v124, 1
    %v126 = vadd.f32 %v124, %v125
    %v127 = vmul.f32 %v120, %v25
    %v128 = vrot.slane %v127, 4
    %v129 = vadd.f32 %v127, %v128
    %v130 = vrot.slane %v129, 2
    %v131 = vadd.f32 %v129, %v130
    %v132 = vrot.slane %v131, 1
    %v133 = vadd.f32 %v131, %v132
    %v134 = vrcp.pop %v126
    %v135 = vmul.f32 %v133, %v134
    %136 = vst [vmem:[%s2] sm:$0x1] %v135
    // Predicated region
    $region14: #{attention_layer_forward.1} parent=1 // pred_check
      _
    $region15: #{attention_layer_forward.1} parent=1 // pred_check_branch
      %138 = sbr.rel (0) target = $region17
    $region16: #{attention_layer_forward.1} parent=1 // pred_region
      _
    $region17: #{attention_layer_forward.1} parent=1 // pred_fallthru
      _
    // Predicated region
    $region18: #{attention_layer_forward.1} parent=1 // pred_check
      _
    $region19: #{attention_layer_forward.1} parent=1 // pred_check_branch
      %140 = sbr.rel (0) target = $region21
    $region20: #{attention_layer_forward.1} parent=1 // pred_region
      _
    $region21: #{attention_layer_forward.1} parent=1 // pred_fallthru
      _
    %141 = vsyncpa [#allocation3], 1

</llo_original>
